<compile_context>
chip_gen: v5e
topology: v5e:2x2
jax: 0.10.0
libtpu: 0.0.40
codegen_flags: <defaults>
</compile_context>

<pallas_src>
import jax
import jax.numpy as jnp
from jax import lax
from jax.experimental import pallas as pl
from jax.experimental.pallas import tpu as pltpu


def attention_kernel(z_ref, w1_ref, b1_ref, w2row_ref, out_ref, alpha_ref):
    # One batch tile: project -> ReLU -> score -> softmax(N) -> weighted sum.
    Bt, N, D = z_ref.shape
    H = w1_ref.shape[1]

    z3 = z_ref[...]                                    # (Bt, N, D) f32
    w1 = w1_ref[...]                                   # (D, H)
    b1 = b1_ref[...]                                   # (1, H)
    w2_row = w2row_ref[...]                            # (1, H) lane-dense score weights

    # --- Hidden projection: one dense 2-D MXU matmul + bias + ReLU ----------
    # NOTE: (Bt*N, D) merge assumes N % 8 == 0 for a free sublane reshape;
    # other N stay correct but may materialize a VMEM relayout copy.
    z2d = z3.reshape(Bt * N, D)
    h = jnp.dot(z2d, w1,
                preferred_element_type=jnp.float32,
                precision=lax.Precision.HIGHEST)       # full f32 (matches torch f32)
    # TODO(synk): for large Bt*N cast z2d/w1 to bf16 for ~2x MXU throughput
    # (keep f32 accumulation); keep all VPU/EUP elementwise work in f32 (v5e).
    h = jnp.maximum(h + b1, 0.0)                       # (Bt*N, H) sublane-bcast bias, VPU ReLU

    # --- Score head: VPU multiply + XLU lane reduction (no (H,1) matmul) ----
    h3 = h.reshape(Bt, N, H)
    s = jnp.sum(h3 * w2_row, axis=-1)                  # (Bt, N) lane-dense scores

    # --- Numerically-stable softmax over the set axis (last axis here) ------
    m = jnp.max(s, axis=-1, keepdims=True)             # (Bt, 1)
    e = jnp.exp(s - m)                                 # (Bt, N)  EUP
    denom = jnp.sum(e, axis=-1, keepdims=True)         # (Bt, 1)
    inv = 1.0 / denom                                  # exact: alpha rows sum to 1
    # TODO(synk): at scale use pl.reciprocal(denom, approx=True) for the pooled
    # path (free EUP slot) while keeping the exact inverse for the alpha output.

    # --- Pooled output with DEFERRED normalization --------------------------
    # Weight by un-normalized e, then scale the small (Bt, D) result: keeps the
    # normalized-alpha broadcast / relayout off the (Bt, N, D)-sized path.
    out_unnorm = jnp.sum(e[:, :, None] * z3, axis=1)   # (Bt, D)
    # TODO(synk): for very large N*D express this pooling as a per-batch
    # (1,N)@(N,D) dot_general so the reduction runs on the MXU instead of XLU.
    out_ref[...] = (out_unnorm * inv).astype(out_ref.dtype)
    alpha_ref[...] = (e * inv).astype(alpha_ref.dtype)
    # TODO(synk): for very large B emit out/alpha transposed (D,B)/(N,B) so the
    # writeback is lane-dense (unmasked vst) and undo it in the JAX wrapper.


def _largest_divisor_leq(n, cap):
    t = max(1, min(n, cap))
    while n % t:
        t -= 1
    return t


def attention_forward(z, w1, b1, w2, *, max_tile_b=512):
    """Pallas forward of the PyTorch Attention module.

    z : (B, N, D);  w1 : (D, H) = Linear(in,hidden).weight.T;  b1 : (1, H);
    w2 : (H, 1) = Linear(hidden,1,bias=False).weight.T.
    Returns (out (B, D), alpha (B, N, 1)).
    """
    B, N, D = z.shape
    H = w1.shape[1]
    w2_row = w2.reshape(1, H)                          # lane-dense layout for the score head

    # Batch-tile grid: amortizes per-call overhead at large B, and the
    # "parallel" axis lets v7x shard tiles across its 2 TensorCores.
    # Tiles sized well under v7x's 64 MiB physical / 32 MiB scoped VMEM.
    block_b = _largest_divisor_leq(B, max_tile_b)
    grid = (B // block_b,)

    itemsize = jnp.dtype(z.dtype).itemsize
    flops = 2 * B * N * D * H + 2 * B * N * H + 2 * B * N * D
    bytes_accessed = (B * N * D + D * H + 2 * H + B * D + B * N) * itemsize
    cost = pl.CostEstimate(flops=flops, transcendentals=B * N,
                           bytes_accessed=bytes_accessed)

    out, alpha2d = pl.pallas_call(
        attention_kernel,
        out_shape=(
            jax.ShapeDtypeStruct((B, D), z.dtype),     # (alpha * z).sum(1)
            jax.ShapeDtypeStruct((B, N), z.dtype),     # alpha, lane-dense (reshaped below)
        ),
        grid=grid,
        in_specs=[
            pl.BlockSpec((block_b, N, D), lambda i: (i, 0, 0)),
            # Grid-invariant index_maps: weights stay resident in VMEM,
            # no re-DMA and no multi-buffering of tiny constant inputs.
            pl.BlockSpec((D, H), lambda i: (0, 0)),
            pl.BlockSpec((1, H), lambda i: (0, 0)),
            pl.BlockSpec((1, H), lambda i: (0, 0)),
        ],
        out_specs=(
            pl.BlockSpec((block_b, D), lambda i: (i, 0)),
            pl.BlockSpec((block_b, N), lambda i: (i, 0)),
        ),
        compiler_params=pltpu.CompilerParams(
            dimension_semantics=("parallel",),
            vmem_limit_bytes=32 * 1024 * 1024,
        ),
        cost_estimate=cost,
    )(z, w1, b1, w2_row)

    return out, alpha2d.reshape(B, N, 1)               # match PyTorch output layout


def attention_ref(z, w1, b1, w2):
    # Pure-JAX reference mirroring the PyTorch forward (full f32 precision).
    hp = lax.Precision.HIGHEST
    h = jnp.maximum(jnp.einsum("bnd,dh->bnh", z, w1, precision=hp) + b1[None, :, :], 0.0)
    w = jnp.einsum("bnh,hk->bnk", h, w2, precision=hp)
    alpha = jax.nn.softmax(w, axis=1)
    return jnp.sum(alpha * z, axis=1), alpha


if __name__ == "__main__":
    B, N, D, H = 2, 8, 32, 128   # batch, set size, in_size, hidden_size

    key = jax.random.PRNGKey(0)
    kz, kw1, kb1, kw2 = jax.random.split(key, 4)

    z = jax.random.normal(kz, (B, N, D), dtype=jnp.float32)
    # Deterministic synthetic parameters (shapes from nn.Linear in __init__).
    w1 = jax.random.normal(kw1, (D, H), dtype=jnp.float32) * 0.1   # Linear(in, hidden).weight^T
    b1 = jax.random.normal(kb1, (1, H), dtype=jnp.float32) * 0.1   # Linear(in, hidden).bias
    w2 = jax.random.normal(kw2, (H, 1), dtype=jnp.float32) * 0.1   # Linear(hidden, 1).weight^T

    out, alpha = attention_forward(z, w1, b1, w2)
    jax.block_until_ready((out, alpha))

    out_ref, alpha_ref = attention_ref(z, w1, b1, w2)
    assert out.shape == (B, D) and alpha.shape == (B, N, 1)
    assert jnp.allclose(out, out_ref, atol=1e-3, rtol=1e-3)
    assert jnp.allclose(alpha, alpha_ref, atol=1e-3, rtol=1e-3)

    print("KERNEL_OK")
</pallas_src>

<mosaic_0001>
module attributes {stable_mosaic.version = 11 : i64} {
  func.func @attention_kernel(%arg0: i32, %arg1: memref<2x8x32xf32, #tpu.memory_space<vmem>>, %arg2: memref<32x128xf32, #tpu.memory_space<vmem>>, %arg3: memref<1x128xf32, #tpu.memory_space<vmem>>, %arg4: memref<1x128xf32, #tpu.memory_space<vmem>>, %arg5: memref<2x32xf32, #tpu.memory_space<vmem>>, %arg6: memref<2x8xf32, #tpu.memory_space<vmem>>) attributes {dimension_semantics = [#tpu.dimension_semantics<parallel>], iteration_bounds = array<i64: 1>, scalar_prefetch = 0 : i64, scratch_operands = 0 : i64, tpu.core_type = #tpu.core_type<tc>, window_params = [{transform_indices = @transform_0, window_bounds = array<i64: 2, 8, 32>}, {pipeline_mode = #tpu.pipeline_mode<synchronous>, transform_indices = @transform_1, window_bounds = array<i64: 32, 128>}, {pipeline_mode = #tpu.pipeline_mode<synchronous>, transform_indices = @transform_2, window_bounds = array<i64: 1, 128>}, {pipeline_mode = #tpu.pipeline_mode<synchronous>, transform_indices = @transform_3, window_bounds = array<i64: 1, 128>}, {transform_indices = @transform_4, window_bounds = array<i64: 2, 32>}, {transform_indices = @transform_5, window_bounds = array<i64: 2, 8>}]} {
    %c0 = arith.constant 0 : index
    %c0_0 = arith.constant 0 : index
    %c0_1 = arith.constant 0 : index
    %0 = vector.load %arg1[%c0, %c0_0, %c0_1] : memref<2x8x32xf32, #tpu.memory_space<vmem>>, vector<2x8x32xf32>
    %c0_2 = arith.constant 0 : index
    %c0_3 = arith.constant 0 : index
    %1 = vector.load %arg2[%c0_2, %c0_3] : memref<32x128xf32, #tpu.memory_space<vmem>>, vector<32x128xf32>
    %c0_4 = arith.constant 0 : index
    %c0_5 = arith.constant 0 : index
    %2 = vector.load %arg3[%c0_4, %c0_5] : memref<1x128xf32, #tpu.memory_space<vmem>>, vector<1x128xf32>
    %c0_6 = arith.constant 0 : index
    %c0_7 = arith.constant 0 : index
    %3 = vector.load %arg4[%c0_6, %c0_7] : memref<1x128xf32, #tpu.memory_space<vmem>>, vector<1x128xf32>
    %4 = vector.shape_cast %0 : vector<2x8x32xf32> to vector<16x32xf32>
    %cst = arith.constant dense<0.000000e+00> : vector<16x128xf32>
    %5 = tpu.matmul %4, %1, %cst {dimension_numbers = #tpu.dot_dimension_numbers<[1], [0], [0], [1], [0, 0, 1, 1], [], []>, precision = #tpu.contract_precision<fp32>} : vector<16x32xf32>, vector<32x128xf32>, vector<16x128xf32> -> vector<16x128xf32>
    %6 = vector.broadcast %2 : vector<1x128xf32> to vector<16x128xf32>
    %7 = arith.addf %5, %6 : vector<16x128xf32>
    %cst_8 = arith.constant 0.000000e+00 : f32
    %8 = vector.broadcast %cst_8 : f32 to vector<16x128xf32>
    %9 = arith.maximumf %7, %8 : vector<16x128xf32>
    %10 = vector.shape_cast %9 : vector<16x128xf32> to vector<2x8x128xf32>
    %11 = vector.shape_cast %3 : vector<1x128xf32> to vector<1x1x128xf32>
    %12 = vector.broadcast %11 : vector<1x1x128xf32> to vector<2x8x128xf32>
    %13 = arith.mulf %10, %12 : vector<2x8x128xf32>
    %cst_9 = arith.constant dense<0.000000e+00> : vector<2x8xf32>
    %14 = vector.multi_reduction <add>, %13, %cst_9 [2] : vector<2x8x128xf32> to vector<2x8xf32>
    %cst_10 = arith.constant dense<0xFF800000> : vector<2xf32>
    %15 = vector.multi_reduction <maximumf>, %14, %cst_10 [1] : vector<2x8xf32> to vector<2xf32>
    %16 = vector.shape_cast %15 : vector<2xf32> to vector<2x1xf32>
    %17 = vector.broadcast %16 : vector<2x1xf32> to vector<2x8xf32>
    %18 = arith.subf %14, %17 : vector<2x8xf32>
    %19 = math.exp %18 : vector<2x8xf32>
    %cst_11 = arith.constant dense<0.000000e+00> : vector<2xf32>
    %20 = vector.multi_reduction <add>, %19, %cst_11 [1] : vector<2x8xf32> to vector<2xf32>
    %21 = vector.shape_cast %20 : vector<2xf32> to vector<2x1xf32>
    %cst_12 = arith.constant 1.000000e+00 : f32
    %22 = vector.broadcast %cst_12 : f32 to vector<2x1xf32>
    %23 = arith.divf %22, %21 : vector<2x1xf32>
    %24 = vector.shape_cast %19 : vector<2x8xf32> to vector<2x8x1xf32>
    %25 = vector.broadcast %24 : vector<2x8x1xf32> to vector<2x8x32xf32>
    %26 = arith.mulf %25, %0 : vector<2x8x32xf32>
    %cst_13 = arith.constant dense<0.000000e+00> : vector<2x32xf32>
    %27 = vector.multi_reduction <add>, %26, %cst_13 [1] : vector<2x8x32xf32> to vector<2x32xf32>
    %28 = vector.broadcast %23 : vector<2x1xf32> to vector<2x32xf32>
    %29 = arith.mulf %27, %28 : vector<2x32xf32>
    %c0_14 = arith.constant 0 : index
    %c0_15 = arith.constant 0 : index
    %30 = vector.load %arg5[%c0_14, %c0_15] : memref<2x32xf32, #tpu.memory_space<vmem>>, vector<2x32xf32>
    tpu.vector_store %arg5[%c0_14, %c0_15], %29 {strides = array<i32>} : memref<2x32xf32, #tpu.memory_space<vmem>>, vector<2x32xf32>,
    %31 = vector.broadcast %23 : vector<2x1xf32> to vector<2x8xf32>
    %32 = arith.mulf %19, %31 : vector<2x8xf32>
    %c0_16 = arith.constant 0 : index
    %c0_17 = arith.constant 0 : index
    %33 = vector.load %arg6[%c0_16, %c0_17] : memref<2x8xf32, #tpu.memory_space<vmem>>, vector<2x8xf32>
    tpu.vector_store %arg6[%c0_16, %c0_17], %32 {strides = array<i32>} : memref<2x8xf32, #tpu.memory_space<vmem>>, vector<2x8xf32>,
    return
  }
  func.func @transform_0(%arg0: i32) -> (i32, i32, i32) {
    %c0_i32 = arith.constant 0 : i32
    %c0_i32_0 = arith.constant 0 : i32
    %c0_i32_1 = arith.constant 0 : i32
    return %arg0, %c0_i32, %c0_i32_0 : i32, i32, i32
  }
  func.func @transform_1(%arg0: i32) -> (i32, i32) {
    %c0_i32 = arith.constant 0 : i32
    %c0_i32_0 = arith.constant 0 : i32
    %c0_i32_1 = arith.constant 0 : i32
    return %c0_i32, %c0_i32_0 : i32, i32
  }
  func.func @transform_2(%arg0: i32) -> (i32, i32) {
    %c0_i32 = arith.constant 0 : i32
    %c0_i32_0 = arith.constant 0 : i32
    %c0_i32_1 = arith.constant 0 : i32
    return %c0_i32, %c0_i32_0 : i32, i32
  }
  func.func @transform_3(%arg0: i32) -> (i32, i32) {
    %c0_i32 = arith.constant 0 : i32
    %c0_i32_0 = arith.constant 0 : i32
    %c0_i32_1 = arith.constant 0 : i32
    return %c0_i32, %c0_i32_0 : i32, i32
  }
  func.func @transform_4(%arg0: i32) -> (i32, i32) {
    %c0_i32 = arith.constant 0 : i32
    %c0_i32_0 = arith.constant 0 : i32
    return %arg0, %c0_i32 : i32, i32
  }
  func.func @transform_5(%arg0: i32) -> (i32, i32) {
    %c0_i32 = arith.constant 0 : i32
    %c0_i32_0 = arith.constant 0 : i32
    return %arg0, %c0_i32 : i32, i32
  }
}

</mosaic_0001>

<llo_original>
// kernel: tpu_custom_call.1
$region0: #{tpu_custom_call.1}
  #allocation0 [shape = 'u32[]', space=smem, size = 0x4, offset = 0x4, fixed_abs, tag = 'smem constant byte address 0x4 - core index']
  #allocation1 [shape = 'u32[72,128]{1,0:T(1,128)}', space=vmem, size = 0x9000, scoped, tag = 'internal scratch']
  %s0 = inlined_call_operand.hbm [shape: f32[2,8,32], index: 0, kind: input, shape index: {}]
  %s1 = inlined_call_operand.hbm [shape: f32[32,128], index: 1, kind: input, shape index: {}]
  %s2 = inlined_call_operand.vmem [shape: f32[1,128], index: 2, kind: input, shape index: {}]
  %s3 = inlined_call_operand.vmem [shape: f32[1,128], index: 3, kind: input, shape index: {}]
  %s4 = inlined_call_operand.hbm [shape: f32[2,32], index: 4, kind: output, shape index: {0}]
  %s5 = inlined_call_operand.hbm [shape: f32[2,8], index: 5, kind: output, shape index: {1}]
  %6 = xla_tuple %s4, %s5
  %s7 = sld [smem:[#allocation0]]
  $region42: #{tpu_custom_call.1} parent=0
    _
  %s9 = ssub.s32 1, %s7
  %s10 = scalar_select 0, %s9, %s7
  $region1: #{tpu_custom_call.1} parent=0
    #allocation2 [shape = 'u8[8192]{0}', space=vmem, size = 0x2000, scoped, tag = 'input window, operand 0, single buffered']
    #allocation3 [shape = 's32[1]{0}', space=sflag, size = 0x4, scoped, tag = 'scoped memory for tpu_custom_call.1']
    #allocation4 [shape = 's32[1]{0}', space=sflag, size = 0x4, scoped, tag = 'scoped memory for tpu_custom_call.1']
    #allocation5 [shape = 'u8[16384]{0}', space=vmem, size = 0x4000, scoped, tag = 'input window, operand 1, single buffered']
    #allocation6 [shape = 's32[1]{0}', space=sflag, size = 0x4, scoped, tag = 'scoped memory for tpu_custom_call.1']
    #allocation7 [shape = 'u8[1024]{0}', space=vmem, size = 0x400, scoped, tag = 'output window, operand 0, single buffered']
    #allocation8 [shape = 'u8[1024]{0}', space=vmem, size = 0x400, scoped, tag = 'output window, operand 1, single buffered']
    #allocation9 [shape = 's32[1]{0}', space=sflag, size = 0x4, scoped, tag = 'scoped memory for tpu_custom_call.1']
    %11 = vsyncpa [#allocation3], 0
    %12 = vsyncpa [#allocation6], 0
    %13 = vsyncpa [#allocation4], 0
    %14 = vsyncpa [#allocation9], 0
    // Predicated region
    $region2: #{tpu_custom_call.1} parent=1 // pred_check
      _
    $region3: #{tpu_custom_call.1} parent=1 // pred_check_branch
      %16 = sbr.rel (0) target = $region5
    $region4: #{tpu_custom_call.1} parent=1 // pred_region
      %18 = vsyncadd [#allocation3], 0
      %s19 = sshll.u32 %s0, 4
      %s20 = int_to_ptr.hbm [resolvable:$true] %s19
      %s21 = sshll.u32 [#allocation2], 4
      %s22 = int_to_ptr.vmem [resolvable:$true] %s21
      %27 = dma.hbm_to_vmem [thread:$0]  %s20, 256, %s22, [#allocation3], 128, 128, 8
    $region5: #{tpu_custom_call.1} parent=1 // pred_fallthru
      _
    // Predicated region
    $region6: #{tpu_custom_call.1} parent=1 // pred_check
      _
    $region7: #{tpu_custom_call.1} parent=1 // pred_check_branch
      %29 = sbr.rel (0) target = $region9
    $region8: #{tpu_custom_call.1} parent=1 // pred_region
      %31 = vsyncadd [#allocation6], 0
      %s32 = sshll.u32 %s1, 4
      %s33 = int_to_ptr.hbm [resolvable:$true] %s32
      %s34 = sshll.u32 [#allocation5], 4
      %s35 = int_to_ptr.vmem [resolvable:$true] %s34
      %40 = dma.hbm_to_vmem [thread:$0]  %s33, 512, %s35, [#allocation6], 128, 128, 8
    $region9: #{tpu_custom_call.1} parent=1 // pred_fallthru
      _
    // Predicated region
    $region10: #{tpu_custom_call.1} parent=1 // pred_check
      _
    $region11: #{tpu_custom_call.1} parent=1 // pred_check_branch
      %42 = sbr.rel (0) target = $region13
    $region12: #{tpu_custom_call.1} parent=1 // pred_region
      _
    $region13: #{tpu_custom_call.1} parent=1 // pred_fallthru
      _
    // Predicated region
    $region14: #{tpu_custom_call.1} parent=1 // pred_check
      _
    $region15: #{tpu_custom_call.1} parent=1 // pred_check_branch
      %44 = sbr.rel (0) target = $region17
    $region16: #{tpu_custom_call.1} parent=1 // pred_region
      _
    $region17: #{tpu_custom_call.1} parent=1 // pred_fallthru
      _
    // Predicated region
    $region18: #{tpu_custom_call.1} parent=1 // pred_check
      _
    $region19: #{tpu_custom_call.1} parent=1 // pred_check_branch
      %46 = sbr.rel (0) target = $region21
    $region20: #{tpu_custom_call.1} parent=1 // pred_region
      %48 = dma.done [#allocation3], 256
    $region21: #{tpu_custom_call.1} parent=1 // pred_fallthru
      _
    // Predicated region
    $region22: #{tpu_custom_call.1} parent=1 // pred_check
      _
    $region23: #{tpu_custom_call.1} parent=1 // pred_check_branch
      %50 = sbr.rel (0) target = $region25
    $region24: #{tpu_custom_call.1} parent=1 // pred_region
      %52 = dma.done [#allocation6], 512
    $region25: #{tpu_custom_call.1} parent=1 // pred_fallthru
      _
    %v53 = vld [vmem:[#allocation2] sm:$0xff]
    %v54 = vld [vmem:[#allocation2 + $0x8] sm:$0xff]
    %v55 = vld [vmem:[#allocation5] sm:$0xff]
    %v56 = vld [vmem:[#allocation5 + $0x8] sm:$0xff]
    %v57 = vld [vmem:[#allocation5 + $0x10] sm:$0xff]
    %v58 = vld [vmem:[#allocation5 + $0x18] sm:$0xff]
    %v59 = vld [vmem:[%s2] sm:$0x1]
    %v60 = vld [vmem:[%s3] sm:$0x1]
    %v62 = vperm.slane %v59, 0
    %vm64 = vcmask 261120
    %v66 = vsel %vm64, %v53, 0
    %v69 = vsel %vm64, %v54, 0
    %71 = vmatpush.msra.mxu0 0.0
    %72 = vmatpush.msra.mxu0 0.0
    %73 = vmatpush.msra.mxu0 0.0
    %74 = vmatpush.msra.mxu0 0.0
    %75 = vmatpush.msra.mxu0 0.0
    %76 = vmatpush.msra.mxu0 0.0
    %77 = vmatpush.msra.mxu0 0.0
    %78 = vmatpush.msra.mxu0 0.0
    %79 = vmatpush.msra.mxu0 0.0
    %80 = vmatpush.msra.mxu0 0.0
    %81 = vmatpush.msra.mxu0 0.0
    %82 = vmatpush.msra.mxu0 0.0
    %v83 = vand.u32 %v58, 4294901760
    %84 = vmatpush.msra.mxu0 %v83
    %v85 = vand.u32 %v57, 4294901760
    %86 = vmatpush.msra.mxu0 %v85
    %v87 = vand.u32 %v56, 4294901760
    %88 = vmatpush.msra.mxu0 %v87
    %v89 = vand.u32 %v55, 4294901760
    %90 = vmatpush.msra.mxu0 %v89
    %v91 = vand.u32 %v66, 4294901760
    %v92 = vsub.f32 %v66, %v91
    %v93 = vand.u32 %v92, 4294901760
    %v94 = vsub.f32 %v92, %v93
    %v95 = vand.u32 %v94, 4294901760
    %96 = vmatmul.f32.gmra.mxu0 %v95
    %v97 = vpop.f32.mrf.mxu0
    %v98 = vadd.f32 %v62, %v97
    %v99 = vand.u32 %v69, 4294901760
    %v100 = vsub.f32 %v69, %v99
    %v101 = vand.u32 %v100, 4294901760
    %v102 = vsub.f32 %v100, %v101
    %v103 = vand.u32 %v102, 4294901760
    %104 = vmatmul.f32.gmra.mxu0 %v103
    %v105 = vpop.f32.mrf.mxu0
    %v106 = vadd.f32 %v62, %v105
    %107 = vdwg.mxu0
    %108 = vmatpush.msra.mxu0 0.0
    %109 = vmatpush.msra.mxu0 0.0
    %110 = vmatpush.msra.mxu0 0.0
    %111 = vmatpush.msra.mxu0 0.0
    %112 = vmatpush.msra.mxu0 0.0
    %113 = vmatpush.msra.mxu0 0.0
    %114 = vmatpush.msra.mxu0 0.0
    %115 = vmatpush.msra.mxu0 0.0
    %116 = vmatpush.msra.mxu0 0.0
    %117 = vmatpush.msra.mxu0 0.0
    %118 = vmatpush.msra.mxu0 0.0
    %119 = vmatpush.msra.mxu0 0.0
    %v120 = vand.u32 %v58, 4294901760
    %v121 = vsub.f32 %v58, %v120
    %v122 = vand.u32 %v121, 4294901760
    %v123 = vsub.f32 %v121, %v122
    %v124 = vand.u32 %v123, 4294901760
    %125 = vmatpush.msra.mxu0 %v124
    %v126 = vand.u32 %v57, 4294901760
    %v127 = vsub.f32 %v57, %v126
    %v128 = vand.u32 %v127, 4294901760
    %v129 = vsub.f32 %v127, %v128
    %v130 = vand.u32 %v129, 4294901760
    %131 = vmatpush.msra.mxu0 %v130
    %v132 = vand.u32 %v56, 4294901760
    %v133 = vsub.f32 %v56, %v132
    %v134 = vand.u32 %v133, 4294901760
    %v135 = vsub.f32 %v133, %v134
    %v136 = vand.u32 %v135, 4294901760
    %137 = vmatpush.msra.mxu0 %v136
    %v138 = vand.u32 %v55, 4294901760
    %v139 = vsub.f32 %v55, %v138
    %v140 = vand.u32 %v139, 4294901760
    %v141 = vsub.f32 %v139, %v140
    %v142 = vand.u32 %v141, 4294901760
    %143 = vmatpush.msra.mxu0 %v142
    %v144 = vand.u32 %v66, 4294901760
    %145 = vmatmul.f32.gmra.mxu0 %v144
    %v146 = vpop.f32.mrf.mxu0
    %v147 = vadd.f32 %v98, %v146
    %v148 = vand.u32 %v69, 4294901760
    %149 = vmatmul.f32.gmra.mxu0 %v148
    %v150 = vpop.f32.mrf.mxu0
    %v151 = vadd.f32 %v106, %v150
    %152 = vdwg.mxu0
    %153 = vmatpush.msra.mxu0 0.0
    %154 = vmatpush.msra.mxu0 0.0
    %155 = vmatpush.msra.mxu0 0.0
    %156 = vmatpush.msra.mxu0 0.0
    %157 = vmatpush.msra.mxu0 0.0
    %158 = vmatpush.msra.mxu0 0.0
    %159 = vmatpush.msra.mxu0 0.0
    %160 = vmatpush.msra.mxu0 0.0
    %161 = vmatpush.msra.mxu0 0.0
    %162 = vmatpush.msra.mxu0 0.0
    %163 = vmatpush.msra.mxu0 0.0
    %164 = vmatpush.msra.mxu0 0.0
    %v165 = vand.u32 %v58, 4294901760
    %v166 = vsub.f32 %v58, %v165
    %167 = vmatpush.msra.mxu0 %v166
    %v168 = vand.u32 %v57, 4294901760
    %v169 = vsub.f32 %v57, %v168
    %170 = vmatpush.msra.mxu0 %v169
    %v171 = vand.u32 %v56, 4294901760
    %v172 = vsub.f32 %v56, %v171
    %173 = vmatpush.msra.mxu0 %v172
    %v174 = vand.u32 %v55, 4294901760
    %v175 = vsub.f32 %v55, %v174
    %176 = vmatpush.msra.mxu0 %v175
    %v177 = vand.u32 %v66, 4294901760
    %v178 = vsub.f32 %v66, %v177
    %179 = vmatmul.f32.gmra.mxu0 %v178
    %v180 = vpop.f32.mrf.mxu0
    %v181 = vadd.f32 %v147, %v180
    %v182 = vand.u32 %v69, 4294901760
    %v183 = vsub.f32 %v69, %v182
    %184 = vmatmul.f32.gmra.mxu0 %v183
    %v185 = vpop.f32.mrf.mxu0
    %v186 = vadd.f32 %v151, %v185
    %187 = vdwg.mxu0
    %188 = vmatpush.msra.mxu0 0.0
    %189 = vmatpush.msra.mxu0 0.0
    %190 = vmatpush.msra.mxu0 0.0
    %191 = vmatpush.msra.mxu0 0.0
    %192 = vmatpush.msra.mxu0 0.0
    %193 = vmatpush.msra.mxu0 0.0
    %194 = vmatpush.msra.mxu0 0.0
    %195 = vmatpush.msra.mxu0 0.0
    %196 = vmatpush.msra.mxu0 0.0
    %197 = vmatpush.msra.mxu0 0.0
    %198 = vmatpush.msra.mxu0 0.0
    %199 = vmatpush.msra.mxu0 0.0
    %v200 = vand.u32 %v58, 4294901760
    %201 = vmatpush.msra.mxu0 %v200
    %v202 = vand.u32 %v57, 4294901760
    %203 = vmatpush.msra.mxu0 %v202
    %v204 = vand.u32 %v56, 4294901760
    %205 = vmatpush.msra.mxu0 %v204
    %v206 = vand.u32 %v55, 4294901760
    %207 = vmatpush.msra.mxu0 %v206
    %v208 = vand.u32 %v66, 4294901760
    %v209 = vsub.f32 %v66, %v208
    %v210 = vand.u32 %v209, 4294901760
    %211 = vmatmul.f32.gmra.mxu0 %v210
    %v212 = vpop.f32.mrf.mxu0
    %v213 = vadd.f32 %v181, %v212
    %v214 = vand.u32 %v69, 4294901760
    %v215 = vsub.f32 %v69, %v214
    %v216 = vand.u32 %v215, 4294901760
    %217 = vmatmul.f32.gmra.mxu0 %v216
    %v218 = vpop.f32.mrf.mxu0
    %v219 = vadd.f32 %v186, %v218
    %220 = vdwg.mxu0
    %221 = vmatpush.msra.mxu0 0.0
    %222 = vmatpush.msra.mxu0 0.0
    %223 = vmatpush.msra.mxu0 0.0
    %224 = vmatpush.msra.mxu0 0.0
    %225 = vmatpush.msra.mxu0 0.0
    %226 = vmatpush.msra.mxu0 0.0
    %227 = vmatpush.msra.mxu0 0.0
    %228 = vmatpush.msra.mxu0 0.0
    %229 = vmatpush.msra.mxu0 0.0
    %230 = vmatpush.msra.mxu0 0.0
    %231 = vmatpush.msra.mxu0 0.0
    %232 = vmatpush.msra.mxu0 0.0
    %v233 = vand.u32 %v58, 4294901760
    %v234 = vsub.f32 %v58, %v233
    %v235 = vand.u32 %v234, 4294901760
    %236 = vmatpush.msra.mxu0 %v235
    %v237 = vand.u32 %v57, 4294901760
    %v238 = vsub.f32 %v57, %v237
    %v239 = vand.u32 %v238, 4294901760
    %240 = vmatpush.msra.mxu0 %v239
    %v241 = vand.u32 %v56, 4294901760
    %v242 = vsub.f32 %v56, %v241
    %v243 = vand.u32 %v242, 4294901760
    %244 = vmatpush.msra.mxu0 %v243
    %v245 = vand.u32 %v55, 4294901760
    %v246 = vsub.f32 %v55, %v245
    %v247 = vand.u32 %v246, 4294901760
    %248 = vmatpush.msra.mxu0 %v247
    %v249 = vand.u32 %v66, 4294901760
    %250 = vmatmul.f32.gmra.mxu0 %v249
    %v251 = vpop.f32.mrf.mxu0
    %v252 = vadd.f32 %v213, %v251
    %v253 = vand.u32 %v69, 4294901760
    %254 = vmatmul.f32.gmra.mxu0 %v253
    %v255 = vpop.f32.mrf.mxu0
    %v256 = vadd.f32 %v219, %v255
    %257 = vdwg.mxu0
    %258 = vmatpush.msra.mxu0 0.0
    %259 = vmatpush.msra.mxu0 0.0
    %260 = vmatpush.msra.mxu0 0.0
    %261 = vmatpush.msra.mxu0 0.0
    %262 = vmatpush.msra.mxu0 0.0
    %263 = vmatpush.msra.mxu0 0.0
    %264 = vmatpush.msra.mxu0 0.0
    %265 = vmatpush.msra.mxu0 0.0
    %266 = vmatpush.msra.mxu0 0.0
    %267 = vmatpush.msra.mxu0 0.0
    %268 = vmatpush.msra.mxu0 0.0
    %269 = vmatpush.msra.mxu0 0.0
    %v270 = vand.u32 %v58, 4294901760
    %271 = vmatpush.msra.mxu0 %v270
    %v272 = vand.u32 %v57, 4294901760
    %273 = vmatpush.msra.mxu0 %v272
    %v274 = vand.u32 %v56, 4294901760
    %275 = vmatpush.msra.mxu0 %v274
    %v276 = vand.u32 %v55, 4294901760
    %277 = vmatpush.msra.mxu0 %v276
    %v278 = vand.u32 %v66, 4294901760
    %279 = vmatmul.f32.gmra.mxu0 %v278
    %v280 = vpop.f32.mrf.mxu0
    %v281 = vadd.f32 %v252, %v280
    %v282 = vand.u32 %v69, 4294901760
    %283 = vmatmul.f32.gmra.mxu0 %v282
    %v284 = vpop.f32.mrf.mxu0
    %v285 = vadd.f32 %v256, %v284
    %286 = vdwg.mxu0
    %v287 = vmax.f32 %v281, 0.0
    %v288 = vmax.f32 %v285, 0.0
    %v290 = vperm.slane %v60, 0
    %v292 = vmul.f32 %v287, %v290
    %v293 = vmul.f32 %v288, %v290
    %294 = vadd.xlane.f32.xlu0 %v292
    %v295 = vpop.xlane.xlu0 %294
    %296 = vadd.xlane.f32.xlu0 %v293
    %v297 = vpop.xlane.xlu0 %296
    %v300 = vlaneseq
    %v301 = vand.u32 %v300, 127
    %v302 = vperm.slane %v295, %v301
    %v303 = vperm.slane %v297, %v301
    %vm304 = vcmask 1041409
    %v305 = vsel %vm304, %v303, %v302
    %vm307 = vcmask 58368
    %v308 = vsel %vm307, %v305, -inf
    %309 = vmax.xlane.f32.xlu0 %v308
    %v310 = vpop.xlane.xlu0 %309
    %v312 = vperm.slane %v310, 0
    %v313 = vperm.slane %v310, 1
    %v316 = vsub.f32 %v295, %v312
    %v317 = vsub.f32 %v297, %v313
    %v318 = vmul.f32 %v316, 1.442695
    %v319 = vpow.pop %v318
    %v320 = vmul.f32 %v317, 1.442695
    %v321 = vpow.pop %v320
    %324 = vset.pattern.permute.xlu0 0
    %325 = vperm.xlu0 %324, %v319
    %v326 = vpop.permute.xlu0 %325
    %327 = vset.pattern.permute.xlu0 0
    %328 = vperm.xlu0 %327, %v321
    %v329 = vpop.permute.xlu0 %328
    %v330 = vperm.slane %v326, %v301
    %v331 = vperm.slane %v329, %v301
    %v332 = vsel %vm304, %v331, %v330
    %v334 = vsel %vm307, %v332, 0.0
    %335 = vadd.xlane.f32.xlu0 %v334
    %v336 = vpop.xlane.xlu0 %335
    %v337 = vrcp.pop %v336
    %v338 = vmul.f32 %v336, %v337
    %v339 = vsub.f32 1.0, %v338
    %v340 = vmul.f32 %v337, %v339
    %v341 = vadd.f32 %v337, %v340
    %vm342 = vweird.f32 %v336
    %vm343 = vweird.f32 %v337
    %vm344 = vmor %vm342, %vm343
    %v345 = vsel %vm344, %v337, %v341
    %v346 = vand.u32 2147483647, %v336
    %vm347 = vcmp.eq.f32.partialorder %v346, 8.507059e+37
    %v348 = vand.u32 %v336, 2147483648
    %v349 = vor.u32 1.1754944e-38, %v348
    %v350 = vsel %vm347, %v349, %v345
    %v351 = vmul.f32 1.0, %v350
    %v354 = vmul.f32 %v326, %v53
    %v355 = vmul.f32 %v329, %v54
    %v356 = vsel %vm64, %v354, 0.0
    %v357 = vrot.slane %v356, 4
    %v358 = vadd.f32 %v356, %v357
    %v359 = vrot.slane %v358, 2
    %v360 = vadd.f32 %v358, %v359
    %v361 = vrot.slane %v360, 1
    %v362 = vadd.f32 %v360, %v361
    %v363 = vsel %vm64, %v355, 0.0
    %v364 = vrot.slane %v363, 4
    %v365 = vadd.f32 %v363, %v364
    %v366 = vrot.slane %v365, 2
    %v367 = vadd.f32 %v365, %v366
    %v368 = vrot.slane %v367, 1
    %v369 = vadd.f32 %v367, %v368
    %v371 = vrot.slane %v351, 1
    %v374 = vmul.f32 %v362, %v351
    %v375 = vmul.f32 %v369, %v371
    %v378 = vrot.slane %v375, 7
    %v379 = vsel %vm304, %v378, %v374
    %vm381 = vcmask 254976
    %382 = vst.msk [vmem:[#allocation7] sm:$0x3] %vm381, %v379
    %v383 = vperm.slane %v351, 0
    %v384 = vperm.slane %v351, 1
    %v387 = vmul.f32 %v319, %v383
    %v388 = vmul.f32 %v321, %v384
    %391 = vset.pattern.permute.xlu0 0
    %392 = vperm.xlu0 %391, %v387
    %v393 = vpop.permute.xlu0 %392
    %394 = vset.pattern.permute.xlu0 0
    %395 = vperm.xlu0 %394, %v388
    %v396 = vpop.permute.xlu0 %395
    %v397 = vperm.slane %v393, %v301
    %v398 = vperm.slane %v396, %v301
    %v399 = vsel %vm304, %v398, %v397
    %401 = vst.msk [vmem:[#allocation8] sm:$0x3] %vm307, %v399
    // Predicated region
    $region26: #{tpu_custom_call.1} parent=1 // pred_check
      _
    $region27: #{tpu_custom_call.1} parent=1 // pred_check_branch
      %403 = sbr.rel (0) target = $region29
    $region28: #{tpu_custom_call.1} parent=1 // pred_region
      %405 = vsyncadd [#allocation4], 0
      %s407 = sshll.u32 [#allocation7], 4
      %s408 = int_to_ptr.vmem [resolvable:$true] %s407
      %s409 = sshll.u32 %s4, 4
      %s410 = int_to_ptr.hbm [resolvable:$true] %s409
      %412 = dma.vmem_to_hbm [thread:$0]  %s408, 32, %s410, [#allocation4]
    $region29: #{tpu_custom_call.1} parent=1 // pred_fallthru
      _
    // Predicated region
    $region30: #{tpu_custom_call.1} parent=1 // pred_check
      _
    $region31: #{tpu_custom_call.1} parent=1 // pred_check_branch
      %414 = sbr.rel (0) target = $region33
    $region32: #{tpu_custom_call.1} parent=1 // pred_region
      %416 = vsyncadd [#allocation9], 0
      %s418 = sshll.u32 [#allocation8], 4
      %s419 = int_to_ptr.vmem [resolvable:$true] %s418
      %s420 = sshll.u32 %s5, 4
      %s421 = int_to_ptr.hbm [resolvable:$true] %s420
      %423 = dma.vmem_to_hbm [thread:$0]  %s419, 32, %s421, [#allocation9]
    $region33: #{tpu_custom_call.1} parent=1 // pred_fallthru
      _
    // Predicated region
    $region34: #{tpu_custom_call.1} parent=1 // pred_check
      _
    $region35: #{tpu_custom_call.1} parent=1 // pred_check_branch
      %425 = sbr.rel (0) target = $region37
    $region36: #{tpu_custom_call.1} parent=1 // pred_region
      %427 = dma.done [#allocation4], 32
    $region37: #{tpu_custom_call.1} parent=1 // pred_fallthru
      _
    // Predicated region
    $region38: #{tpu_custom_call.1} parent=1 // pred_check
      _
    $region39: #{tpu_custom_call.1} parent=1 // pred_check_branch
      %429 = sbr.rel (0) target = $region41
    $region40: #{tpu_custom_call.1} parent=1 // pred_region
      %431 = dma.done [#allocation9], 32
    $region41: #{tpu_custom_call.1} parent=1 // pred_fallthru
      _
    %432 = vsyncpa [#allocation3], 1
    %433 = vsyncpa [#allocation6], 1
    %434 = vsyncpa [#allocation4], 1
    %435 = vsyncpa [#allocation9], 1

</llo_original>
